<compile_context>
chip_gen: v7x
topology: tpu7x:2x2x1
jax: 0.10.0
libtpu: 0.0.40
codegen_flags: <defaults>
</compile_context>

<pallas_src>
import functools

import jax
import jax.numpy as jnp
from jax.experimental import pallas as pl
from jax.experimental.pallas import tpu as pltpu


def _cnn_encoder_kernel(x_ref, *refs, N, cfgs):
    """Fused 4x (Conv1d + ReLU), whole batch in one invocation.

    x_ref : (C_in0, N*L0)  input with batch folded into the lane axis
    refs  : w1, b1, w2, b2, w3, b3, w4, b4, o_ref
            w_i   : (C_out_i, K_i*C_in_i)  pre-flattened (k-major) weights
            b_i   : (C_out_i, 1)
            o_ref : (C_out_last, N*L_out_last)
    cfgs  : static per-layer tuples (C_in, C_out, K, P, L_in, L_pad, L_out)
    """
    o_ref = refs[-1]
    w_refs = refs[0:-1:2]
    b_refs = refs[1:-1:2]

    h = x_ref[...].astype(jnp.float32)                       # (C_in, N*L_in)
    for i, cfg in enumerate(cfgs):
        C_in, C_out, K, P, L_in, L_pad, L_out = cfg

        # In-kernel zero padding: each element's chunk becomes
        # [P zeros | activation | P zeros] -> (C_in, N*L_pad).  Since P == K,
        # windows straddling two batch elements are never among the L_out
        # valid output positions kept below.
        zpad = jnp.zeros((C_in, P), jnp.float32)
        pieces = []
        for n in range(N):
            pieces += [zpad, h[:, n * L_in:(n + 1) * L_in], zpad]
        xp = jnp.concatenate(pieces, axis=1)                  # (C_in, N*L_pad)

        # im2col: stack the K shifted slices along sublanes -> one MXU matmul.
        W = N * L_pad - K + 1
        xcol = jnp.concatenate([xp[:, k:k + W] for k in range(K)], axis=0)

        acc = jnp.dot(w_refs[i][...], xcol,                   # (C_out, W)
                      preferred_element_type=jnp.float32)
        y = jnp.maximum(acc + b_refs[i][...], 0.0)            # bias + ReLU

        # Keep only the L_out valid columns of each batch element.
        h = jnp.concatenate(
            [y[:, n * L_pad:n * L_pad + L_out] for n in range(N)], axis=1)

    o_ref[...] = h.astype(o_ref.dtype)                        # (C_out, N*L_out)


def cnn_encoder_forward(params, x,
                        conv1_kernel=3, conv2_kernel=3, conv3_kernel=3,
                        stride1=1, stride2=1, stride3=1):
    """x: (N, 1, L) f32 -> (N, 64, L_out) f32, matching the PyTorch module."""
    kernels = [conv1_kernel, conv2_kernel, conv3_kernel, conv3_kernel]
    strides = [stride1, stride2, stride3, stride3]
    # TODO(synk): stride != 1 not implemented (module defaults are stride=1).
    assert all(s == 1 for s in strides), "only stride=1 implemented"

    N, C_in0, L = x.shape
    cfgs = []
    L_in = L
    for (w, _), K in zip(params, kernels):
        C_out, C_in, Kw = w.shape
        assert Kw == K and (C_in == C_in0 or cfgs)
        P = K                                    # padding = kernel size (as in module)
        L_pad = L_in + 2 * P
        L_out = L_pad - K + 1
        cfgs.append((C_in, C_out, K, P, L_in, L_pad, L_out))
        L_in = L_out
    C_out_f, L_out_f = cfgs[-1][1], cfgs[-1][6]

    # Batch folded into the lane axis: (C, N*L).
    x2d = jnp.transpose(x, (1, 0, 2)).reshape(C_in0, N * L)

    # Pre-flatten weights to (C_out, K*C_in) with k-major contraction index so
    # the kernel never slices the tiny lane-minor K axis; biases as (C_out, 1).
    flat = []
    for (w, b), cfg in zip(params, cfgs):
        C_in, C_out, K = cfg[0], cfg[1], cfg[2]
        flat += [jnp.transpose(w, (0, 2, 1)).reshape(C_out, K * C_in),
                 b.reshape(C_out, 1)]

    kernel = functools.partial(_cnn_encoder_kernel, N=N, cfgs=tuple(cfgs))
    out2d = pl.pallas_call(
        kernel,
        out_shape=jax.ShapeDtypeStruct((C_out_f, N * L_out_f), jnp.float32),
        grid=(1,),
        in_specs=[pl.BlockSpec(x2d.shape, lambda i: (0, 0))]
                 + [pl.BlockSpec(a.shape, lambda i: (0, 0)) for a in flat],
        out_specs=pl.BlockSpec((C_out_f, N * L_out_f), lambda i: (0, 0)),
        compiler_params=pltpu.CompilerParams(
            dimension_semantics=("arbitrary",)),
    )(x2d, *flat)

    # (C_out, N*L_out) -> (N, C_out, L_out): wrapper-side layout plumbing only.
    return out2d.reshape(C_out_f, N, L_out_f).transpose(1, 0, 2)


def init_conv_params(key, c_in, c_out, k):
    """Deterministic init mimicking PyTorch Conv1d default (uniform ±1/sqrt(fan_in))."""
    kw, kb = jax.random.split(key)
    bound = 1.0 / jnp.sqrt(c_in * k)
    w = jax.random.uniform(kw, (c_out, c_in, k), jnp.float32, -bound, bound)
    b = jax.random.uniform(kb, (c_out,), jnp.float32, -bound, bound)
    return w, b


def cnn_encoder_params(key, conv1_kernel=3, conv2_kernel=3, conv3_kernel=3):
    ks = jax.random.split(key, 4)
    return [
        init_conv_params(ks[0], 1, 8, conv1_kernel),
        init_conv_params(ks[1], 8, 16, conv2_kernel),
        init_conv_params(ks[2], 16, 32, conv3_kernel),
        init_conv_params(ks[3], 32, 64, conv3_kernel),
    ]


def _reference_forward(params, x, kernels=(3, 3, 3, 3), strides=(1, 1, 1, 1)):
    # Pure-JAX reference (lax conv) for a correctness check.
    for (w, b), k, s in zip(params, kernels, strides):
        y = jax.lax.conv_general_dilated(
            x, w, window_strides=(s,), padding=[(k, k)],
            dimension_numbers=("NCH", "OIH", "NCH"))
        x = jnp.maximum(y + b.reshape(1, -1, 1), 0.0)
    return x


if __name__ == "__main__":
    key = jax.random.PRNGKey(0)
    k_params, k_x = jax.random.split(key)

    # Input: batch=2, channels=1 (module requires C_in=1), length=16
    x = jax.random.normal(k_x, (2, 1, 16), dtype=jnp.float32)
    params = cnn_encoder_params(k_params)

    forward = jax.jit(cnn_encoder_forward)
    out = forward(params, x)
    out = jax.block_until_ready(out)

    ref = _reference_forward(params, x)
    assert out.shape == (2, 64, 32), out.shape
    assert jnp.allclose(out, ref, atol=1e-4, rtol=1e-4), "mismatch vs reference"

    print("KERNEL_OK")
</pallas_src>

<mosaic_0001>
module attributes {stable_mosaic.version = 11 : i64} {
  func.func @_cnn_encoder_kernel(%arg0: i32, %arg1: memref<1x32xf32, #tpu.memory_space<vmem>>, %arg2: memref<8x3xf32, #tpu.memory_space<vmem>>, %arg3: memref<8x1xf32, #tpu.memory_space<vmem>>, %arg4: memref<16x24xf32, #tpu.memory_space<vmem>>, %arg5: memref<16x1xf32, #tpu.memory_space<vmem>>, %arg6: memref<32x48xf32, #tpu.memory_space<vmem>>, %arg7: memref<32x1xf32, #tpu.memory_space<vmem>>, %arg8: memref<64x96xf32, #tpu.memory_space<vmem>>, %arg9: memref<64x1xf32, #tpu.memory_space<vmem>>, %arg10: memref<64x64xf32, #tpu.memory_space<vmem>>) attributes {dimension_semantics = [#tpu.dimension_semantics<arbitrary>], iteration_bounds = array<i64: 1>, scalar_prefetch = 0 : i64, scratch_operands = 0 : i64, tpu.core_type = #tpu.core_type<tc>, window_params = [{pipeline_mode = #tpu.pipeline_mode<synchronous>, transform_indices = @transform_0, window_bounds = array<i64: 1, 32>}, {pipeline_mode = #tpu.pipeline_mode<synchronous>, transform_indices = @transform_1, window_bounds = array<i64: 8, 3>}, {pipeline_mode = #tpu.pipeline_mode<synchronous>, transform_indices = @transform_2, window_bounds = array<i64: 8, 1>}, {pipeline_mode = #tpu.pipeline_mode<synchronous>, transform_indices = @transform_3, window_bounds = array<i64: 16, 24>}, {pipeline_mode = #tpu.pipeline_mode<synchronous>, transform_indices = @transform_4, window_bounds = array<i64: 16, 1>}, {pipeline_mode = #tpu.pipeline_mode<synchronous>, transform_indices = @transform_5, window_bounds = array<i64: 32, 48>}, {pipeline_mode = #tpu.pipeline_mode<synchronous>, transform_indices = @transform_6, window_bounds = array<i64: 32, 1>}, {pipeline_mode = #tpu.pipeline_mode<synchronous>, transform_indices = @transform_7, window_bounds = array<i64: 64, 96>}, {pipeline_mode = #tpu.pipeline_mode<synchronous>, transform_indices = @transform_8, window_bounds = array<i64: 64, 1>}, {pipeline_mode = #tpu.pipeline_mode<synchronous>, transform_indices = @transform_9, window_bounds = array<i64: 64, 64>}]} {
    %c0 = arith.constant 0 : index
    %c0_0 = arith.constant 0 : index
    %0 = vector.load %arg1[%c0, %c0_0] : memref<1x32xf32, #tpu.memory_space<vmem>>, vector<1x32xf32>
    %cst = arith.constant 0.000000e+00 : f32
    %1 = vector.broadcast %cst : f32 to vector<1x3xf32>
    %2 = vector.extract_strided_slice %0 {offsets = [0, 0], sizes = [1, 16], strides = [1, 1]} : vector<1x32xf32> to vector<1x16xf32>
    %3 = vector.extract_strided_slice %0 {offsets = [0, 16], sizes = [1, 16], strides = [1, 1]} : vector<1x32xf32> to vector<1x16xf32>
    %4 = tpu.concatenate %1, %2, %1, %1, %3, %1 in 1 : vector<1x3xf32>, vector<1x16xf32>, vector<1x3xf32>, vector<1x3xf32>, vector<1x16xf32>, vector<1x3xf32> -> vector<1x44xf32>
    %5 = vector.extract_strided_slice %4 {offsets = [0, 0], sizes = [1, 42], strides = [1, 1]} : vector<1x44xf32> to vector<1x42xf32>
    %6 = vector.extract_strided_slice %4 {offsets = [0, 1], sizes = [1, 42], strides = [1, 1]} : vector<1x44xf32> to vector<1x42xf32>
    %7 = vector.extract_strided_slice %4 {offsets = [0, 2], sizes = [1, 42], strides = [1, 1]} : vector<1x44xf32> to vector<1x42xf32>
    %8 = tpu.concatenate %5, %6, %7 in 0 : vector<1x42xf32>, vector<1x42xf32>, vector<1x42xf32> -> vector<3x42xf32>
    %c0_1 = arith.constant 0 : index
    %c0_2 = arith.constant 0 : index
    %9 = vector.load %arg2[%c0_1, %c0_2] : memref<8x3xf32, #tpu.memory_space<vmem>>, vector<8x3xf32>
    %cst_3 = arith.constant dense<0.000000e+00> : vector<8x42xf32>
    %10 = tpu.matmul %9, %8, %cst_3 {dimension_numbers = #tpu.dot_dimension_numbers<[1], [0], [0], [1], [0, 0, 1, 1], [], []>} : vector<8x3xf32>, vector<3x42xf32>, vector<8x42xf32> -> vector<8x42xf32>
    %c0_4 = arith.constant 0 : index
    %c0_5 = arith.constant 0 : index
    %11 = vector.load %arg3[%c0_4, %c0_5] : memref<8x1xf32, #tpu.memory_space<vmem>>, vector<8x1xf32>
    %12 = vector.broadcast %11 : vector<8x1xf32> to vector<8x42xf32>
    %13 = arith.addf %10, %12 : vector<8x42xf32>
    %cst_6 = arith.constant 0.000000e+00 : f32
    %14 = vector.broadcast %cst_6 : f32 to vector<8x42xf32>
    %15 = arith.maximumf %13, %14 : vector<8x42xf32>
    %16 = vector.extract_strided_slice %15 {offsets = [0, 0], sizes = [8, 20], strides = [1, 1]} : vector<8x42xf32> to vector<8x20xf32>
    %17 = vector.extract_strided_slice %15 {offsets = [0, 22], sizes = [8, 20], strides = [1, 1]} : vector<8x42xf32> to vector<8x20xf32>
    %18 = tpu.concatenate %16, %17 in 1 : vector<8x20xf32>, vector<8x20xf32> -> vector<8x40xf32>
    %cst_7 = arith.constant 0.000000e+00 : f32
    %19 = vector.broadcast %cst_7 : f32 to vector<8x3xf32>
    %20 = vector.extract_strided_slice %18 {offsets = [0, 0], sizes = [8, 20], strides = [1, 1]} : vector<8x40xf32> to vector<8x20xf32>
    %21 = vector.extract_strided_slice %18 {offsets = [0, 20], sizes = [8, 20], strides = [1, 1]} : vector<8x40xf32> to vector<8x20xf32>
    %22 = tpu.concatenate %19, %20, %19, %19, %21, %19 in 1 : vector<8x3xf32>, vector<8x20xf32>, vector<8x3xf32>, vector<8x3xf32>, vector<8x20xf32>, vector<8x3xf32> -> vector<8x52xf32>
    %23 = vector.extract_strided_slice %22 {offsets = [0, 0], sizes = [8, 50], strides = [1, 1]} : vector<8x52xf32> to vector<8x50xf32>
    %24 = vector.extract_strided_slice %22 {offsets = [0, 1], sizes = [8, 50], strides = [1, 1]} : vector<8x52xf32> to vector<8x50xf32>
    %25 = vector.extract_strided_slice %22 {offsets = [0, 2], sizes = [8, 50], strides = [1, 1]} : vector<8x52xf32> to vector<8x50xf32>
    %26 = tpu.concatenate %23, %24, %25 in 0 : vector<8x50xf32>, vector<8x50xf32>, vector<8x50xf32> -> vector<24x50xf32>
    %c0_8 = arith.constant 0 : index
    %c0_9 = arith.constant 0 : index
    %27 = vector.load %arg4[%c0_8, %c0_9] : memref<16x24xf32, #tpu.memory_space<vmem>>, vector<16x24xf32>
    %cst_10 = arith.constant dense<0.000000e+00> : vector<16x50xf32>
    %28 = tpu.matmul %27, %26, %cst_10 {dimension_numbers = #tpu.dot_dimension_numbers<[1], [0], [0], [1], [0, 0, 1, 1], [], []>} : vector<16x24xf32>, vector<24x50xf32>, vector<16x50xf32> -> vector<16x50xf32>
    %c0_11 = arith.constant 0 : index
    %c0_12 = arith.constant 0 : index
    %29 = vector.load %arg5[%c0_11, %c0_12] : memref<16x1xf32, #tpu.memory_space<vmem>>, vector<16x1xf32>
    %30 = vector.broadcast %29 : vector<16x1xf32> to vector<16x50xf32>
    %31 = arith.addf %28, %30 : vector<16x50xf32>
    %cst_13 = arith.constant 0.000000e+00 : f32
    %32 = vector.broadcast %cst_13 : f32 to vector<16x50xf32>
    %33 = arith.maximumf %31, %32 : vector<16x50xf32>
    %34 = vector.extract_strided_slice %33 {offsets = [0, 0], sizes = [16, 24], strides = [1, 1]} : vector<16x50xf32> to vector<16x24xf32>
    %35 = vector.extract_strided_slice %33 {offsets = [0, 26], sizes = [16, 24], strides = [1, 1]} : vector<16x50xf32> to vector<16x24xf32>
    %36 = tpu.concatenate %34, %35 in 1 : vector<16x24xf32>, vector<16x24xf32> -> vector<16x48xf32>
    %cst_14 = arith.constant 0.000000e+00 : f32
    %37 = vector.broadcast %cst_14 : f32 to vector<16x3xf32>
    %38 = vector.extract_strided_slice %36 {offsets = [0, 0], sizes = [16, 24], strides = [1, 1]} : vector<16x48xf32> to vector<16x24xf32>
    %39 = vector.extract_strided_slice %36 {offsets = [0, 24], sizes = [16, 24], strides = [1, 1]} : vector<16x48xf32> to vector<16x24xf32>
    %40 = tpu.concatenate %37, %38, %37, %37, %39, %37 in 1 : vector<16x3xf32>, vector<16x24xf32>, vector<16x3xf32>, vector<16x3xf32>, vector<16x24xf32>, vector<16x3xf32> -> vector<16x60xf32>
    %41 = vector.extract_strided_slice %40 {offsets = [0, 0], sizes = [16, 58], strides = [1, 1]} : vector<16x60xf32> to vector<16x58xf32>
    %42 = vector.extract_strided_slice %40 {offsets = [0, 1], sizes = [16, 58], strides = [1, 1]} : vector<16x60xf32> to vector<16x58xf32>
    %43 = vector.extract_strided_slice %40 {offsets = [0, 2], sizes = [16, 58], strides = [1, 1]} : vector<16x60xf32> to vector<16x58xf32>
    %44 = tpu.concatenate %41, %42, %43 in 0 : vector<16x58xf32>, vector<16x58xf32>, vector<16x58xf32> -> vector<48x58xf32>
    %c0_15 = arith.constant 0 : index
    %c0_16 = arith.constant 0 : index
    %45 = vector.load %arg6[%c0_15, %c0_16] : memref<32x48xf32, #tpu.memory_space<vmem>>, vector<32x48xf32>
    %cst_17 = arith.constant dense<0.000000e+00> : vector<32x58xf32>
    %46 = tpu.matmul %45, %44, %cst_17 {dimension_numbers = #tpu.dot_dimension_numbers<[1], [0], [0], [1], [0, 0, 1, 1], [], []>} : vector<32x48xf32>, vector<48x58xf32>, vector<32x58xf32> -> vector<32x58xf32>
    %c0_18 = arith.constant 0 : index
    %c0_19 = arith.constant 0 : index
    %47 = vector.load %arg7[%c0_18, %c0_19] : memref<32x1xf32, #tpu.memory_space<vmem>>, vector<32x1xf32>
    %48 = vector.broadcast %47 : vector<32x1xf32> to vector<32x58xf32>
    %49 = arith.addf %46, %48 : vector<32x58xf32>
    %cst_20 = arith.constant 0.000000e+00 : f32
    %50 = vector.broadcast %cst_20 : f32 to vector<32x58xf32>
    %51 = arith.maximumf %49, %50 : vector<32x58xf32>
    %52 = vector.extract_strided_slice %51 {offsets = [0, 0], sizes = [32, 28], strides = [1, 1]} : vector<32x58xf32> to vector<32x28xf32>
    %53 = vector.extract_strided_slice %51 {offsets = [0, 30], sizes = [32, 28], strides = [1, 1]} : vector<32x58xf32> to vector<32x28xf32>
    %54 = tpu.concatenate %52, %53 in 1 : vector<32x28xf32>, vector<32x28xf32> -> vector<32x56xf32>
    %cst_21 = arith.constant 0.000000e+00 : f32
    %55 = vector.broadcast %cst_21 : f32 to vector<32x3xf32>
    %56 = vector.extract_strided_slice %54 {offsets = [0, 0], sizes = [32, 28], strides = [1, 1]} : vector<32x56xf32> to vector<32x28xf32>
    %57 = vector.extract_strided_slice %54 {offsets = [0, 28], sizes = [32, 28], strides = [1, 1]} : vector<32x56xf32> to vector<32x28xf32>
    %58 = tpu.concatenate %55, %56, %55, %55, %57, %55 in 1 : vector<32x3xf32>, vector<32x28xf32>, vector<32x3xf32>, vector<32x3xf32>, vector<32x28xf32>, vector<32x3xf32> -> vector<32x68xf32>
    %59 = vector.extract_strided_slice %58 {offsets = [0, 0], sizes = [32, 66], strides = [1, 1]} : vector<32x68xf32> to vector<32x66xf32>
    %60 = vector.extract_strided_slice %58 {offsets = [0, 1], sizes = [32, 66], strides = [1, 1]} : vector<32x68xf32> to vector<32x66xf32>
    %61 = vector.extract_strided_slice %58 {offsets = [0, 2], sizes = [32, 66], strides = [1, 1]} : vector<32x68xf32> to vector<32x66xf32>
    %62 = tpu.concatenate %59, %60, %61 in 0 : vector<32x66xf32>, vector<32x66xf32>, vector<32x66xf32> -> vector<96x66xf32>
    %c0_22 = arith.constant 0 : index
    %c0_23 = arith.constant 0 : index
    %63 = vector.load %arg8[%c0_22, %c0_23] : memref<64x96xf32, #tpu.memory_space<vmem>>, vector<64x96xf32>
    %cst_24 = arith.constant dense<0.000000e+00> : vector<64x66xf32>
    %64 = tpu.matmul %63, %62, %cst_24 {dimension_numbers = #tpu.dot_dimension_numbers<[1], [0], [0], [1], [0, 0, 1, 1], [], []>} : vector<64x96xf32>, vector<96x66xf32>, vector<64x66xf32> -> vector<64x66xf32>
    %c0_25 = arith.constant 0 : index
    %c0_26 = arith.constant 0 : index
    %65 = vector.load %arg9[%c0_25, %c0_26] : memref<64x1xf32, #tpu.memory_space<vmem>>, vector<64x1xf32>
    %66 = vector.broadcast %65 : vector<64x1xf32> to vector<64x66xf32>
    %67 = arith.addf %64, %66 : vector<64x66xf32>
    %cst_27 = arith.constant 0.000000e+00 : f32
    %68 = vector.broadcast %cst_27 : f32 to vector<64x66xf32>
    %69 = arith.maximumf %67, %68 : vector<64x66xf32>
    %70 = vector.extract_strided_slice %69 {offsets = [0, 0], sizes = [64, 32], strides = [1, 1]} : vector<64x66xf32> to vector<64x32xf32>
    %71 = vector.extract_strided_slice %69 {offsets = [0, 34], sizes = [64, 32], strides = [1, 1]} : vector<64x66xf32> to vector<64x32xf32>
    %72 = tpu.concatenate %70, %71 in 1 : vector<64x32xf32>, vector<64x32xf32> -> vector<64x64xf32>
    %c0_28 = arith.constant 0 : index
    %c0_29 = arith.constant 0 : index
    %73 = vector.load %arg10[%c0_28, %c0_29] : memref<64x64xf32, #tpu.memory_space<vmem>>, vector<64x64xf32>
    tpu.vector_store %arg10[%c0_28, %c0_29], %72 {strides = array<i32>} : memref<64x64xf32, #tpu.memory_space<vmem>>, vector<64x64xf32>,
    return
  }
  func.func @transform_0(%arg0: i32) -> (i32, i32) {
    %c0_i32 = arith.constant 0 : i32
    %c0_i32_0 = arith.constant 0 : i32
    %c0_i32_1 = arith.constant 0 : i32
    return %c0_i32, %c0_i32_0 : i32, i32
  }
  func.func @transform_1(%arg0: i32) -> (i32, i32) {
    %c0_i32 = arith.constant 0 : i32
    %c0_i32_0 = arith.constant 0 : i32
    %c0_i32_1 = arith.constant 0 : i32
    return %c0_i32, %c0_i32_0 : i32, i32
  }
  func.func @transform_2(%arg0: i32) -> (i32, i32) {
    %c0_i32 = arith.constant 0 : i32
    %c0_i32_0 = arith.constant 0 : i32
    %c0_i32_1 = arith.constant 0 : i32
    return %c0_i32, %c0_i32_0 : i32, i32
  }
  func.func @transform_3(%arg0: i32) -> (i32, i32) {
    %c0_i32 = arith.constant 0 : i32
    %c0_i32_0 = arith.constant 0 : i32
    %c0_i32_1 = arith.constant 0 : i32
    return %c0_i32, %c0_i32_0 : i32, i32
  }
  func.func @transform_4(%arg0: i32) -> (i32, i32) {
    %c0_i32 = arith.constant 0 : i32
    %c0_i32_0 = arith.constant 0 : i32
    %c0_i32_1 = arith.constant 0 : i32
    return %c0_i32, %c0_i32_0 : i32, i32
  }
  func.func @transform_5(%arg0: i32) -> (i32, i32) {
    %c0_i32 = arith.constant 0 : i32
    %c0_i32_0 = arith.constant 0 : i32
    %c0_i32_1 = arith.constant 0 : i32
    return %c0_i32, %c0_i32_0 : i32, i32
  }
  func.func @transform_6(%arg0: i32) -> (i32, i32) {
    %c0_i32 = arith.constant 0 : i32
    %c0_i32_0 = arith.constant 0 : i32
    %c0_i32_1 = arith.constant 0 : i32
    return %c0_i32, %c0_i32_0 : i32, i32
  }
  func.func @transform_7(%arg0: i32) -> (i32, i32) {
    %c0_i32 = arith.constant 0 : i32
    %c0_i32_0 = arith.constant 0 : i32
    %c0_i32_1 = arith.constant 0 : i32
    return %c0_i32, %c0_i32_0 : i32, i32
  }
  func.func @transform_8(%arg0: i32) -> (i32, i32) {
    %c0_i32 = arith.constant 0 : i32
    %c0_i32_0 = arith.constant 0 : i32
    %c0_i32_1 = arith.constant 0 : i32
    return %c0_i32, %c0_i32_0 : i32, i32
  }
  func.func @transform_9(%arg0: i32) -> (i32, i32) {
    %c0_i32 = arith.constant 0 : i32
    %c0_i32_0 = arith.constant 0 : i32
    %c0_i32_1 = arith.constant 0 : i32
    return %c0_i32, %c0_i32_0 : i32, i32
  }
}

</mosaic_0001>

<llo_original>
// kernel: cnn_encoder_forward.1
$region0: #{cnn_encoder_forward.1}
  #allocation0 [shape = 'u32[]', space=smem, size = 0x4, offset = 0x4, fixed_abs, tag = 'smem constant byte address 0x4 - core index']
  #allocation1 [shape = 'u32[144,128]{1,0:T(1,128)}', space=vmem, size = 0x12000, scoped, tag = 'internal scratch']
  %s0 = inlined_call_operand.vmem [shape: f32[1,32], index: 0, kind: input, shape index: {}]
  %s1 = inlined_call_operand.vmem [shape: f32[8,3], index: 1, kind: input, shape index: {}]
  %s2 = inlined_call_operand.vmem [shape: f32[8,1], index: 2, kind: input, shape index: {}]
  %s3 = inlined_call_operand.vmem [shape: f32[16,24], index: 3, kind: input, shape index: {}]
  %s4 = inlined_call_operand.vmem [shape: f32[16,1], index: 4, kind: input, shape index: {}]
  %s5 = inlined_call_operand.vmem [shape: f32[32,48], index: 5, kind: input, shape index: {}]
  %s6 = inlined_call_operand.vmem [shape: f32[32,1], index: 6, kind: input, shape index: {}]
  %s7 = inlined_call_operand.vmem [shape: f32[64,96], index: 7, kind: input, shape index: {}]
  %s8 = inlined_call_operand.vmem [shape: f32[64,1], index: 8, kind: input, shape index: {}]
  %s9 = inlined_call_operand.vmem [shape: f32[64,64], index: 9, kind: output, shape index: {}]
  %s10 = sld [smem:[#allocation0]]
  $region46: #{cnn_encoder_forward.1} parent=0
    _
  %s12 = ssub.s32 1, %s10
  %s13 = scalar_select 0, %s12, %s10
  // Predicated region
  $region2: #{cnn_encoder_forward.1} parent=0 // pred_check
    _
  $region3: #{cnn_encoder_forward.1} parent=0 // pred_check_branch
    %15 = sbr.rel (0) target = $region5
  $region4: #{cnn_encoder_forward.1} parent=0 // pred_region
    _
  $region5: #{cnn_encoder_forward.1} parent=0 // pred_fallthru
    _
  // Predicated region
  $region6: #{cnn_encoder_forward.1} parent=0 // pred_check
    _
  $region7: #{cnn_encoder_forward.1} parent=0 // pred_check_branch
    %17 = sbr.rel (0) target = $region9
  $region8: #{cnn_encoder_forward.1} parent=0 // pred_region
    _
  $region9: #{cnn_encoder_forward.1} parent=0 // pred_fallthru
    _
  // Predicated region
  $region10: #{cnn_encoder_forward.1} parent=0 // pred_check
    _
  $region11: #{cnn_encoder_forward.1} parent=0 // pred_check_branch
    %19 = sbr.rel (0) target = $region13
  $region12: #{cnn_encoder_forward.1} parent=0 // pred_region
    _
  $region13: #{cnn_encoder_forward.1} parent=0 // pred_fallthru
    _
  // Predicated region
  $region14: #{cnn_encoder_forward.1} parent=0 // pred_check
    _
  $region15: #{cnn_encoder_forward.1} parent=0 // pred_check_branch
    %21 = sbr.rel (0) target = $region17
  $region16: #{cnn_encoder_forward.1} parent=0 // pred_region
    _
  $region17: #{cnn_encoder_forward.1} parent=0 // pred_fallthru
    _
  // Predicated region
  $region18: #{cnn_encoder_forward.1} parent=0 // pred_check
    _
  $region19: #{cnn_encoder_forward.1} parent=0 // pred_check_branch
    %23 = sbr.rel (0) target = $region21
  $region20: #{cnn_encoder_forward.1} parent=0 // pred_region
    _
  $region21: #{cnn_encoder_forward.1} parent=0 // pred_fallthru
    _
  // Predicated region
  $region22: #{cnn_encoder_forward.1} parent=0 // pred_check
    _
  $region23: #{cnn_encoder_forward.1} parent=0 // pred_check_branch
    %25 = sbr.rel (0) target = $region25
  $region24: #{cnn_encoder_forward.1} parent=0 // pred_region
    _
  $region25: #{cnn_encoder_forward.1} parent=0 // pred_fallthru
    _
  // Predicated region
  $region26: #{cnn_encoder_forward.1} parent=0 // pred_check
    _
  $region27: #{cnn_encoder_forward.1} parent=0 // pred_check_branch
    %27 = sbr.rel (0) target = $region29
  $region28: #{cnn_encoder_forward.1} parent=0 // pred_region
    _
  $region29: #{cnn_encoder_forward.1} parent=0 // pred_fallthru
    _
  // Predicated region
  $region30: #{cnn_encoder_forward.1} parent=0 // pred_check
    _
  $region31: #{cnn_encoder_forward.1} parent=0 // pred_check_branch
    %29 = sbr.rel (0) target = $region33
  $region32: #{cnn_encoder_forward.1} parent=0 // pred_region
    _
  $region33: #{cnn_encoder_forward.1} parent=0 // pred_fallthru
    _
  // Predicated region
  $region34: #{cnn_encoder_forward.1} parent=0 // pred_check
    _
  $region35: #{cnn_encoder_forward.1} parent=0 // pred_check_branch
    %31 = sbr.rel (0) target = $region37
  $region36: #{cnn_encoder_forward.1} parent=0 // pred_region
    _
  $region37: #{cnn_encoder_forward.1} parent=0 // pred_fallthru
    _
  %v32 = vld [vmem:[%s0] sm:$0x1]
  %v34 = vlaneseq
  %v35 = vshrl.u32 %v34, 7
  %v36 = vsub.s32 0, %v35
  %v37 = vrot.slane %v32, %v36
  %38 = vrot.lane.b32.xlu0 %v37, 3
  %v39 = vpop.permute.xlu0 %38
  %41 = vrot.lane.b32.xlu0 %v37, 9
  %v42 = vpop.permute.xlu0 %41
  %vm44 = vcmask 23552
  %v45 = vsel %vm44, 0.0, %v39
  %vm46 = vcmask 154624
  %v47 = vsel %vm46, %v45, 0.0
  %vm48 = vcmask 179200
  %v49 = vsel %vm48, %v47, 0.0
  %vm50 = vcmask 203776
  %v51 = vsel %vm50, %v49, %v42
  %vm52 = vcmask 334848
  %v53 = vsel %vm52, %v51, 0.0
  %v55 = vrot.slane %v53, 7
  %56 = vrot.lane.b32.xlu0 %v55, 127
  %v57 = vpop.permute.xlu0 %56
  %v59 = vrot.slane %v53, 6
  %60 = vrot.lane.b32.xlu0 %v59, 126
  %v61 = vpop.permute.xlu0 %60
  %vm63 = vcmask 1040384
  %v64 = vsel %vm63, %v53, %v57
  %vm65 = vcmask 1041408
  %v66 = vsel %vm65, %v64, %v61
  %v67 = vld [vmem:[%s1] sm:$0xff]
  %v68 = vld [vmem:[%s2] sm:$0xff]
  %70 = vset.pattern.permute.xlu0 0
  %71 = vperm.xlu0 %70, %v68
  %v72 = vpop.permute.xlu0 %71
  %v75 = vsel %vm44, %v67, 0
  %vm77 = vcmask 1042432
  %v79 = vsel %vm77, %v66, 0
  %81 = vmatprep.subr.mxu0 0.0
  %82 = vmatpush1.msra.mxu0 %v79
  %83 = vmatprep.subr.mxu0 0.0
  %84 = vmatpush1.msra.mxu0 0.0
  %85 = vmatprep.subr.mxu0 0.0
  %86 = vmatpush1.msra.mxu0 0.0
  %87 = vmatprep.subr.mxu0 0.0
  %88 = vmatpush1.msra.mxu0 0.0
  %89 = vmatprep.subr.mxu0 0.0
  %90 = vmatpush1.msra.mxu0 0.0
  %91 = vmatprep.subr.mxu0 0.0
  %92 = vmatpush1.msra.mxu0 0.0
  %93 = vmatprep.subr.mxu0 0.0
  %94 = vmatpush1.msra.mxu0 0.0
  %95 = vmatprep.subr.mxu0 0.0
  %96 = vmatpush1.msra.mxu0 0.0
  %97 = vmatprep.subr.mxu0 0.0
  %98 = vmatpush1.msra.mxu0 0.0
  %99 = vmatprep.subr.mxu0 0.0
  %100 = vmatpush1.msra.mxu0 0.0
  %101 = vmatprep.subr.mxu0 0.0
  %102 = vmatpush1.msra.mxu0 0.0
  %103 = vmatprep.subr.mxu0 0.0
  %104 = vmatpush1.msra.mxu0 0.0
  %105 = vmatprep.subr.mxu0 0.0
  %106 = vmatpush1.msra.mxu0 0.0
  %107 = vmatprep.subr.mxu0 0.0
  %108 = vmatpush1.msra.mxu0 0.0
  %109 = vmatprep.subr.mxu0 0.0
  %110 = vmatpush1.msra.mxu0 0.0
  %111 = vmatprep.subr.mxu0 0.0
  %112 = vmatpush1.msra.mxu0 0.0
  %113 = vmatprep.subr.mxu0 0.0
  %114 = vmatpush1.msra.mxu0 0.0
  %115 = vmatprep.subr.mxu0 0.0
  %116 = vmatpush1.msra.mxu0 0.0
  %117 = vmatprep.subr.mxu0 0.0
  %118 = vmatpush1.msra.mxu0 0.0
  %119 = vmatprep.subr.mxu0 0.0
  %120 = vmatpush1.msra.mxu0 0.0
  %121 = vmatprep.subr.mxu0 0.0
  %122 = vmatpush1.msra.mxu0 0.0
  %123 = vmatprep.subr.mxu0 0.0
  %124 = vmatpush1.msra.mxu0 0.0
  %125 = vmatprep.subr.mxu0 0.0
  %126 = vmatpush1.msra.mxu0 0.0
  %127 = vmatprep.subr.mxu0 0.0
  %128 = vmatpush1.msra.mxu0 0.0
  %129 = vmatprep.subr.mxu0 0.0
  %130 = vmatpush1.msra.mxu0 0.0
  %131 = vmatprep.subr.mxu0 0.0
  %132 = vmatpush1.msra.mxu0 0.0
  %133 = vmatprep.subr.mxu0 0.0
  %134 = vmatpush1.msra.mxu0 0.0
  %135 = vmatprep.subr.mxu0 0.0
  %136 = vmatpush1.msra.mxu0 0.0
  %137 = vmatprep.subr.mxu0 0.0
  %138 = vmatpush1.msra.mxu0 0.0
  %139 = vmatprep.subr.mxu0 0.0
  %140 = vmatpush1.msra.mxu0 0.0
  %141 = vmatprep.subr.mxu0 0.0
  %142 = vmatpush1.msra.mxu0 0.0
  %143 = vmatprep.subr.mxu0 0.0
  %144 = vmatpush1.msra.mxu0 0.0
  %145 = vmatprep.mubr.f32.mxu0 0.0
  %146 = vmatmul.mubr.f32.gmra.mrb[0].mxu0 %v75
  %v147 = vpop.f32.mrb[0].mxu0
  %v148 = vadd.f32 %v72, %v147
  %v149 = vpop.f32.mrb[0].mxu0
  %150 = vdwg.mxu0
  %v151 = vmax.f32 %v148, 0.0
  %153 = vrot.lane.b32.xlu0 %v151, 126
  %v154 = vpop.permute.xlu0 %153
  %vm156 = vcmask 162816
  %v157 = vsel %vm156, %v151, %v154
  %159 = vrot.lane.b32.xlu0 %v157, 3
  %v160 = vpop.permute.xlu0 %159
  %162 = vrot.lane.b32.xlu0 %v157, 9
  %v163 = vpop.permute.xlu0 %162
  %v165 = vsel %vm44, 0.0, %v160
  %vm166 = vcmask 187392
  %v167 = vsel %vm166, %v165, 0.0
  %vm168 = vcmask 211968
  %v169 = vsel %vm168, %v167, 0.0
  %vm170 = vcmask 236544
  %v171 = vsel %vm170, %v169, %v163
  %vm172 = vcmask 400384
  %v173 = vsel %vm172, %v171, 0.0
  %175 = vrot.lane.b32.xlu0 %v173, 127
  %v176 = vpop.permute.xlu0 %175
  %178 = vrot.lane.b32.xlu0 %v173, 126
  %v179 = vpop.permute.xlu0 %178
  %v181 = vld [vmem:[%s3] sm:$0xff]
  %v182 = vld [vmem:[%s3 + $0x8] sm:$0xff]
  %v183 = vld [vmem:[%s4] sm:$0xff]
  %v184 = vld [vmem:[%s4 + $0x8] sm:$0xff]
  %186 = vset.pattern.permute.xlu0 0
  %187 = vperm.xlu0 %186, %v183
  %v188 = vpop.permute.xlu0 %187
  %191 = vset.pattern.permute.xlu0 0
  %192 = vperm.xlu0 %191, %v184
  %v193 = vpop.permute.xlu0 %192
  %vm195 = vcmask 195584
  %v197 = vsel %vm195, %v181, 0
  %v200 = vsel %vm195, %v182, 0
  %202 = vmatprep.subr.mxu0 0.0
  %203 = vmatpush1.msra.mxu0 %v173
  %204 = vmatprep.subr.mxu0 0.0
  %205 = vmatpush1.msra.mxu0 %v176
  %206 = vmatprep.subr.mxu0 0.0
  %207 = vmatpush1.msra.mxu0 %v179
  %208 = vmatprep.subr.mxu0 0.0
  %209 = vmatpush1.msra.mxu0 0.0
  %210 = vmatprep.subr.mxu0 0.0
  %211 = vmatpush1.msra.mxu0 0.0
  %212 = vmatprep.subr.mxu0 0.0
  %213 = vmatpush1.msra.mxu0 0.0
  %214 = vmatprep.subr.mxu0 0.0
  %215 = vmatpush1.msra.mxu0 0.0
  %216 = vmatprep.subr.mxu0 0.0
  %217 = vmatpush1.msra.mxu0 0.0
  %218 = vmatprep.subr.mxu0 0.0
  %219 = vmatpush1.msra.mxu0 0.0
  %220 = vmatprep.subr.mxu0 0.0
  %221 = vmatpush1.msra.mxu0 0.0
  %222 = vmatprep.subr.mxu0 0.0
  %223 = vmatpush1.msra.mxu0 0.0
  %224 = vmatprep.subr.mxu0 0.0
  %225 = vmatpush1.msra.mxu0 0.0
  %226 = vmatprep.subr.mxu0 0.0
  %227 = vmatpush1.msra.mxu0 0.0
  %228 = vmatprep.subr.mxu0 0.0
  %229 = vmatpush1.msra.mxu0 0.0
  %230 = vmatprep.subr.mxu0 0.0
  %231 = vmatpush1.msra.mxu0 0.0
  %232 = vmatprep.subr.mxu0 0.0
  %233 = vmatpush1.msra.mxu0 0.0
  %234 = vmatprep.subr.mxu0 0.0
  %235 = vmatpush1.msra.mxu0 0.0
  %236 = vmatprep.subr.mxu0 0.0
  %237 = vmatpush1.msra.mxu0 0.0
  %238 = vmatprep.subr.mxu0 0.0
  %239 = vmatpush1.msra.mxu0 0.0
  %240 = vmatprep.subr.mxu0 0.0
  %241 = vmatpush1.msra.mxu0 0.0
  %242 = vmatprep.subr.mxu0 0.0
  %243 = vmatpush1.msra.mxu0 0.0
  %244 = vmatprep.subr.mxu0 0.0
  %245 = vmatpush1.msra.mxu0 0.0
  %246 = vmatprep.subr.mxu0 0.0
  %247 = vmatpush1.msra.mxu0 0.0
  %248 = vmatprep.subr.mxu0 0.0
  %249 = vmatpush1.msra.mxu0 0.0
  %250 = vmatprep.subr.mxu0 0.0
  %251 = vmatpush1.msra.mxu0 0.0
  %252 = vmatprep.subr.mxu0 0.0
  %253 = vmatpush1.msra.mxu0 0.0
  %254 = vmatprep.subr.mxu0 0.0
  %255 = vmatpush1.msra.mxu0 0.0
  %256 = vmatprep.subr.mxu0 0.0
  %257 = vmatpush1.msra.mxu0 0.0
  %258 = vmatprep.subr.mxu0 0.0
  %259 = vmatpush1.msra.mxu0 0.0
  %260 = vmatprep.subr.mxu0 0.0
  %261 = vmatpush1.msra.mxu0 0.0
  %262 = vmatprep.subr.mxu0 0.0
  %263 = vmatpush1.msra.mxu0 0.0
  %264 = vmatprep.subr.mxu0 0.0
  %265 = vmatpush1.msra.mxu0 0.0
  %266 = vmatprep.mubr.f32.mxu0 0.0
  %267 = vmatmul.mubr.f32.gmra.mrb[0].mxu0 %v197
  %v268 = vpop.f32.mrb[0].mxu0
  %v269 = vadd.f32 %v188, %v268
  %v270 = vpop.f32.mrb[0].mxu0
  %271 = vmatprep.mubr.f32.mxu0 0.0
  %272 = vmatmul.mubr.f32.gmra.mrb[0].mxu0 %v200
  %v273 = vpop.f32.mrb[0].mxu0
  %v274 = vadd.f32 %v193, %v273
  %v275 = vpop.f32.mrb[0].mxu0
  %276 = vdwg.mxu0
  %v277 = vmax.f32 %v269, 0.0
  %v278 = vmax.f32 %v274, 0.0
  %281 = vrot.lane.b32.xlu0 %v277, 126
  %v282 = vpop.permute.xlu0 %281
  %283 = vrot.lane.b32.xlu0 %v278, 126
  %v284 = vpop.permute.xlu0 %283
  %v287 = vsel %vm195, %v277, %v282
  %v288 = vsel %vm195, %v278, %v284
  %291 = vrot.lane.b32.xlu0 %v287, 3
  %v292 = vpop.permute.xlu0 %291
  %293 = vrot.lane.b32.xlu0 %v288, 3
  %v294 = vpop.permute.xlu0 %293
  %297 = vrot.lane.b32.xlu0 %v287, 9
  %v298 = vpop.permute.xlu0 %297
  %299 = vrot.lane.b32.xlu0 %v288, 9
  %v300 = vpop.permute.xlu0 %299
  %v303 = vsel %vm44, 0.0, %v292
  %v304 = vsel %vm44, 0.0, %v294
  %vm305 = vcmask 220160
  %v306 = vsel %vm305, %v303, 0.0
  %v307 = vsel %vm305, %v304, 0.0
  %vm308 = vcmask 244736
  %v309 = vsel %vm308, %v306, 0.0
  %v310 = vsel %vm308, %v307, 0.0
  %vm311 = vcmask 269312
  %v312 = vsel %vm311, %v309, %v298
  %v313 = vsel %vm311, %v310, %v300
  %vm314 = vcmask 465920
  %v315 = vsel %vm314, %v312, 0.0
  %v316 = vsel %vm314, %v313, 0.0
  %319 = vrot.lane.b32.xlu0 %v315, 127
  %v320 = vpop.permute.xlu0 %319
  %321 = vrot.lane.b32.xlu0 %v316, 127
  %v322 = vpop.permute.xlu0 %321
  %325 = vrot.lane.b32.xlu0 %v315, 126
  %v326 = vpop.permute.xlu0 %325
  %327 = vrot.lane.b32.xlu0 %v316, 126
  %v328 = vpop.permute.xlu0 %327
  %v331 = vld [vmem:[%s5] sm:$0xff]
  %v332 = vld [vmem:[%s5 + $0x8] sm:$0xff]
  %v333 = vld [vmem:[%s5 + $0x10] sm:$0xff]
  %v334 = vld [vmem:[%s5 + $0x18] sm:$0xff]
  %v335 = vld [vmem:[%s6] sm:$0xff]
  %v336 = vld [vmem:[%s6 + $0x8] sm:$0xff]
  %v337 = vld [vmem:[%s6 + $0x10] sm:$0xff]
  %v338 = vld [vmem:[%s6 + $0x18] sm:$0xff]
  %340 = vset.pattern.permute.xlu0 0
  %341 = vperm.xlu0 %340, %v335
  %v342 = vpop.permute.xlu0 %341
  %345 = vset.pattern.permute.xlu0 0
  %346 = vperm.xlu0 %345, %v336
  %v347 = vpop.permute.xlu0 %346
  %350 = vset.pattern.permute.xlu0 0
  %351 = vperm.xlu0 %350, %v337
  %v352 = vpop.permute.xlu0 %351
  %355 = vset.pattern.permute.xlu0 0
  %356 = vperm.xlu0 %355, %v338
  %v357 = vpop.permute.xlu0 %356
  %vm359 = vcmask 392192
  %v361 = vsel %vm359, %v331, 0
  %v364 = vsel %vm359, %v332, 0
  %v367 = vsel %vm359, %v333, 0
  %v370 = vsel %vm359, %v334, 0
  %372 = vmatprep.subr.mxu0 0.0
  %373 = vmatpush1.msra.mxu0 %v315
  %374 = vmatprep.subr.mxu0 0.0
  %375 = vmatpush1.msra.mxu0 %v316
  %376 = vmatprep.subr.mxu0 0.0
  %377 = vmatpush1.msra.mxu0 %v320
  %378 = vmatprep.subr.mxu0 0.0
  %379 = vmatpush1.msra.mxu0 %v322
  %380 = vmatprep.subr.mxu0 0.0
  %381 = vmatpush1.msra.mxu0 %v326
  %382 = vmatprep.subr.mxu0 0.0
  %383 = vmatpush1.msra.mxu0 %v328
  %384 = vmatprep.subr.mxu0 0.0
  %385 = vmatpush1.msra.mxu0 0.0
  %386 = vmatprep.subr.mxu0 0.0
  %387 = vmatpush1.msra.mxu0 0.0
  %388 = vmatprep.subr.mxu0 0.0
  %389 = vmatpush1.msra.mxu0 0.0
  %390 = vmatprep.subr.mxu0 0.0
  %391 = vmatpush1.msra.mxu0 0.0
  %392 = vmatprep.subr.mxu0 0.0
  %393 = vmatpush1.msra.mxu0 0.0
  %394 = vmatprep.subr.mxu0 0.0
  %395 = vmatpush1.msra.mxu0 0.0
  %396 = vmatprep.subr.mxu0 0.0
  %397 = vmatpush1.msra.mxu0 0.0
  %398 = vmatprep.subr.mxu0 0.0
  %399 = vmatpush1.msra.mxu0 0.0
  %400 = vmatprep.subr.mxu0 0.0
  %401 = vmatpush1.msra.mxu0 0.0
  %402 = vmatprep.subr.mxu0 0.0
  %403 = vmatpush1.msra.mxu0 0.0
  %404 = vmatprep.subr.mxu0 0.0
  %405 = vmatpush1.msra.mxu0 0.0
  %406 = vmatprep.subr.mxu0 0.0
  %407 = vmatpush1.msra.mxu0 0.0
  %408 = vmatprep.subr.mxu0 0.0
  %409 = vmatpush1.msra.mxu0 0.0
  %410 = vmatprep.subr.mxu0 0.0
  %411 = vmatpush1.msra.mxu0 0.0
  %412 = vmatprep.subr.mxu0 0.0
  %413 = vmatpush1.msra.mxu0 0.0
  %414 = vmatprep.subr.mxu0 0.0
  %415 = vmatpush1.msra.mxu0 0.0
  %416 = vmatprep.subr.mxu0 0.0
  %417 = vmatpush1.msra.mxu0 0.0
  %418 = vmatprep.subr.mxu0 0.0
  %419 = vmatpush1.msra.mxu0 0.0
  %420 = vmatprep.subr.mxu0 0.0
  %421 = vmatpush1.msra.mxu0 0.0
  %422 = vmatprep.subr.mxu0 0.0
  %423 = vmatpush1.msra.mxu0 0.0
  %424 = vmatprep.subr.mxu0 0.0
  %425 = vmatpush1.msra.mxu0 0.0
  %426 = vmatprep.subr.mxu0 0.0
  %427 = vmatpush1.msra.mxu0 0.0
  %428 = vmatprep.subr.mxu0 0.0
  %429 = vmatpush1.msra.mxu0 0.0
  %430 = vmatprep.subr.mxu0 0.0
  %431 = vmatpush1.msra.mxu0 0.0
  %432 = vmatprep.subr.mxu0 0.0
  %433 = vmatpush1.msra.mxu0 0.0
  %434 = vmatprep.subr.mxu0 0.0
  %435 = vmatpush1.msra.mxu0 0.0
  %436 = vmatprep.mubr.f32.mxu0 0.0
  %437 = vmatmul.mubr.f32.gmra.mrb[0].mxu0 %v361
  %v438 = vpop.f32.mrb[0].mxu0
  %v439 = vadd.f32 %v342, %v438
  %v440 = vpop.f32.mrb[0].mxu0
  %441 = vmatprep.mubr.f32.mxu0 0.0
  %442 = vmatmul.mubr.f32.gmra.mrb[0].mxu0 %v364
  %v443 = vpop.f32.mrb[0].mxu0
  %v444 = vadd.f32 %v347, %v443
  %v445 = vpop.f32.mrb[0].mxu0
  %446 = vmatprep.mubr.f32.mxu0 0.0
  %447 = vmatmul.mubr.f32.gmra.mrb[0].mxu0 %v367
  %v448 = vpop.f32.mrb[0].mxu0
  %v449 = vadd.f32 %v352, %v448
  %v450 = vpop.f32.mrb[0].mxu0
  %451 = vmatprep.mubr.f32.mxu0 0.0
  %452 = vmatmul.mubr.f32.gmra.mrb[0].mxu0 %v370
  %v453 = vpop.f32.mrb[0].mxu0
  %v454 = vadd.f32 %v357, %v453
  %v455 = vpop.f32.mrb[0].mxu0
  %456 = vdwg.mxu0
  %v457 = vmax.f32 %v439, 0.0
  %v458 = vmax.f32 %v444, 0.0
  %v459 = vmax.f32 %v449, 0.0
  %v460 = vmax.f32 %v454, 0.0
  %465 = vrot.lane.b32.xlu0 %v457, 126
  %v466 = vpop.permute.xlu0 %465
  %467 = vrot.lane.b32.xlu0 %v458, 126
  %v468 = vpop.permute.xlu0 %467
  %469 = vrot.lane.b32.xlu0 %v459, 126
  %v470 = vpop.permute.xlu0 %469
  %471 = vrot.lane.b32.xlu0 %v460, 126
  %v472 = vpop.permute.xlu0 %471
  %vm477 = vcmask 228352
  %v478 = vsel %vm477, %v457, %v466
  %v479 = vsel %vm477, %v458, %v468
  %v480 = vsel %vm477, %v459, %v470
  %v481 = vsel %vm477, %v460, %v472
  %486 = vrot.lane.b32.xlu0 %v478, 3
  %v487 = vpop.permute.xlu0 %486
  %488 = vrot.lane.b32.xlu0 %v479, 3
  %v489 = vpop.permute.xlu0 %488
  %490 = vrot.lane.b32.xlu0 %v480, 3
  %v491 = vpop.permute.xlu0 %490
  %492 = vrot.lane.b32.xlu0 %v481, 3
  %v493 = vpop.permute.xlu0 %492
  %498 = vrot.lane.b32.xlu0 %v478, 9
  %v499 = vpop.permute.xlu0 %498
  %500 = vrot.lane.b32.xlu0 %v479, 9
  %v501 = vpop.permute.xlu0 %500
  %502 = vrot.lane.b32.xlu0 %v480, 9
  %v503 = vpop.permute.xlu0 %502
  %504 = vrot.lane.b32.xlu0 %v481, 9
  %v505 = vpop.permute.xlu0 %504
  %v510 = vsel %vm44, 0.0, %v487
  %v511 = vsel %vm44, 0.0, %v489
  %v512 = vsel %vm44, 0.0, %v491
  %v513 = vsel %vm44, 0.0, %v493
  %vm514 = vcmask 252928
  %v515 = vsel %vm514, %v510, 0.0
  %v516 = vsel %vm514, %v511, 0.0
  %v517 = vsel %vm514, %v512, 0.0
  %v518 = vsel %vm514, %v513, 0.0
  %vm519 = vcmask 277504
  %v520 = vsel %vm519, %v515, 0.0
  %v521 = vsel %vm519, %v516, 0.0
  %v522 = vsel %vm519, %v517, 0.0
  %v523 = vsel %vm519, %v518, 0.0
  %vm524 = vcmask 302080
  %v525 = vsel %vm524, %v520, %v499
  %v526 = vsel %vm524, %v521, %v501
  %v527 = vsel %vm524, %v522, %v503
  %v528 = vsel %vm524, %v523, %v505
  %vm529 = vcmask 531456
  %v530 = vsel %vm529, %v525, 0.0
  %v531 = vsel %vm529, %v526, 0.0
  %v532 = vsel %vm529, %v527, 0.0
  %v533 = vsel %vm529, %v528, 0.0
  %538 = vrot.lane.b32.xlu0 %v530, 127
  %v539 = vpop.permute.xlu0 %538
  %540 = vrot.lane.b32.xlu0 %v531, 127
  %v541 = vpop.permute.xlu0 %540
  %542 = vrot.lane.b32.xlu0 %v532, 127
  %v543 = vpop.permute.xlu0 %542
  %544 = vrot.lane.b32.xlu0 %v533, 127
  %v545 = vpop.permute.xlu0 %544
  %550 = vrot.lane.b32.xlu0 %v530, 126
  %v551 = vpop.permute.xlu0 %550
  %552 = vrot.lane.b32.xlu0 %v531, 126
  %v553 = vpop.permute.xlu0 %552
  %554 = vrot.lane.b32.xlu0 %v532, 126
  %v555 = vpop.permute.xlu0 %554
  %556 = vrot.lane.b32.xlu0 %v533, 126
  %v557 = vpop.permute.xlu0 %556
  %v562 = vld [vmem:[%s7] sm:$0xff]
  %v563 = vld [vmem:[%s7 + $0x8] sm:$0xff]
  %v564 = vld [vmem:[%s7 + $0x10] sm:$0xff]
  %v565 = vld [vmem:[%s7 + $0x18] sm:$0xff]
  %v566 = vld [vmem:[%s7 + $0x20] sm:$0xff]
  %v567 = vld [vmem:[%s7 + $0x28] sm:$0xff]
  %v568 = vld [vmem:[%s7 + $0x30] sm:$0xff]
  %v569 = vld [vmem:[%s7 + $0x38] sm:$0xff]
  %v570 = vld [vmem:[%s8] sm:$0xff]
  %v571 = vld [vmem:[%s8 + $0x8] sm:$0xff]
  %v572 = vld [vmem:[%s8 + $0x10] sm:$0xff]
  %v573 = vld [vmem:[%s8 + $0x18] sm:$0xff]
  %v574 = vld [vmem:[%s8 + $0x20] sm:$0xff]
  %v575 = vld [vmem:[%s8 + $0x28] sm:$0xff]
  %v576 = vld [vmem:[%s8 + $0x30] sm:$0xff]
  %v577 = vld [vmem:[%s8 + $0x38] sm:$0xff]
  %579 = vset.pattern.permute.xlu0 0
  %580 = vperm.xlu0 %579, %v570
  %v581 = vpop.permute.xlu0 %580
  %584 = vset.pattern.permute.xlu0 0
  %585 = vperm.xlu0 %584, %v571
  %v586 = vpop.permute.xlu0 %585
  %589 = vset.pattern.permute.xlu0 0
  %590 = vperm.xlu0 %589, %v572
  %v591 = vpop.permute.xlu0 %590
  %594 = vset.pattern.permute.xlu0 0
  %595 = vperm.xlu0 %594, %v573
  %v596 = vpop.permute.xlu0 %595
  %599 = vset.pattern.permute.xlu0 0
  %600 = vperm.xlu0 %599, %v574
  %v601 = vpop.permute.xlu0 %600
  %604 = vset.pattern.permute.xlu0 0
  %605 = vperm.xlu0 %604, %v575
  %v606 = vpop.permute.xlu0 %605
  %609 = vset.pattern.permute.xlu0 0
  %610 = vperm.xlu0 %609, %v576
  %v611 = vpop.permute.xlu0 %610
  %614 = vset.pattern.permute.xlu0 0
  %615 = vperm.xlu0 %614, %v577
  %v616 = vpop.permute.xlu0 %615
  %vm618 = vcmask 785408
  %v620 = vsel %vm618, %v562, 0
  %v623 = vsel %vm618, %v563, 0
  %v626 = vsel %vm618, %v564, 0
  %v629 = vsel %vm618, %v565, 0
  %v632 = vsel %vm618, %v566, 0
  %v635 = vsel %vm618, %v567, 0
  %v638 = vsel %vm618, %v568, 0
  %v641 = vsel %vm618, %v569, 0
  %643 = vmatprep.subr.mxu0 0.0
  %644 = vmatpush1.msra.mxu0 %v530
  %645 = vmatprep.subr.mxu0 0.0
  %646 = vmatpush1.msra.mxu0 %v531
  %647 = vmatprep.subr.mxu0 0.0
  %648 = vmatpush1.msra.mxu0 %v532
  %649 = vmatprep.subr.mxu0 0.0
  %650 = vmatpush1.msra.mxu0 %v533
  %651 = vmatprep.subr.mxu0 0.0
  %652 = vmatpush1.msra.mxu0 %v539
  %653 = vmatprep.subr.mxu0 0.0
  %654 = vmatpush1.msra.mxu0 %v541
  %655 = vmatprep.subr.mxu0 0.0
  %656 = vmatpush1.msra.mxu0 %v543
  %657 = vmatprep.subr.mxu0 0.0
  %658 = vmatpush1.msra.mxu0 %v545
  %659 = vmatprep.subr.mxu0 0.0
  %660 = vmatpush1.msra.mxu0 %v551
  %661 = vmatprep.subr.mxu0 0.0
  %662 = vmatpush1.msra.mxu0 %v553
  %663 = vmatprep.subr.mxu0 0.0
  %664 = vmatpush1.msra.mxu0 %v555
  %665 = vmatprep.subr.mxu0 0.0
  %666 = vmatpush1.msra.mxu0 %v557
  %667 = vmatprep.subr.mxu0 0.0
  %668 = vmatpush1.msra.mxu0 0.0
  %669 = vmatprep.subr.mxu0 0.0
  %670 = vmatpush1.msra.mxu0 0.0
  %671 = vmatprep.subr.mxu0 0.0
  %672 = vmatpush1.msra.mxu0 0.0
  %673 = vmatprep.subr.mxu0 0.0
  %674 = vmatpush1.msra.mxu0 0.0
  %675 = vmatprep.subr.mxu0 0.0
  %676 = vmatpush1.msra.mxu0 0.0
  %677 = vmatprep.subr.mxu0 0.0
  %678 = vmatpush1.msra.mxu0 0.0
  %679 = vmatprep.subr.mxu0 0.0
  %680 = vmatpush1.msra.mxu0 0.0
  %681 = vmatprep.subr.mxu0 0.0
  %682 = vmatpush1.msra.mxu0 0.0
  %683 = vmatprep.subr.mxu0 0.0
  %684 = vmatpush1.msra.mxu0 0.0
  %685 = vmatprep.subr.mxu0 0.0
  %686 = vmatpush1.msra.mxu0 0.0
  %687 = vmatprep.subr.mxu0 0.0
  %688 = vmatpush1.msra.mxu0 0.0
  %689 = vmatprep.subr.mxu0 0.0
  %690 = vmatpush1.msra.mxu0 0.0
  %691 = vmatprep.subr.mxu0 0.0
  %692 = vmatpush1.msra.mxu0 0.0
  %693 = vmatprep.subr.mxu0 0.0
  %694 = vmatpush1.msra.mxu0 0.0
  %695 = vmatprep.subr.mxu0 0.0
  %696 = vmatpush1.msra.mxu0 0.0
  %697 = vmatprep.subr.mxu0 0.0
  %698 = vmatpush1.msra.mxu0 0.0
  %699 = vmatprep.subr.mxu0 0.0
  %700 = vmatpush1.msra.mxu0 0.0
  %701 = vmatprep.subr.mxu0 0.0
  %702 = vmatpush1.msra.mxu0 0.0
  %703 = vmatprep.subr.mxu0 0.0
  %704 = vmatpush1.msra.mxu0 0.0
  %705 = vmatprep.subr.mxu0 0.0
  %706 = vmatpush1.msra.mxu0 0.0
  %707 = vmatprep.mubr.f32.mxu0 0.0
  %708 = vmatmul.mubr.f32.gmra.mrb[0].mxu0 %v620
  %v709 = vpop.f32.mrb[0].mxu0
  %v710 = vadd.f32 %v581, %v709
  %v711 = vpop.f32.mrb[0].mxu0
  %712 = vmatprep.mubr.f32.mxu0 0.0
  %713 = vmatmul.mubr.f32.gmra.mrb[0].mxu0 %v623
  %v714 = vpop.f32.mrb[0].mxu0
  %v715 = vadd.f32 %v586, %v714
  %v716 = vpop.f32.mrb[0].mxu0
  %717 = vmatprep.mubr.f32.mxu0 0.0
  %718 = vmatmul.mubr.f32.gmra.mrb[0].mxu0 %v626
  %v719 = vpop.f32.mrb[0].mxu0
  %v720 = vadd.f32 %v591, %v719
  %v721 = vpop.f32.mrb[0].mxu0
  %722 = vmatprep.mubr.f32.mxu0 0.0
  %723 = vmatmul.mubr.f32.gmra.mrb[0].mxu0 %v629
  %v724 = vpop.f32.mrb[0].mxu0
  %v725 = vadd.f32 %v596, %v724
  %v726 = vpop.f32.mrb[0].mxu0
  %727 = vmatprep.mubr.f32.mxu0 0.0
  %728 = vmatmul.mubr.f32.gmra.mrb[0].mxu0 %v632
  %v729 = vpop.f32.mrb[0].mxu0
  %v730 = vadd.f32 %v601, %v729
  %v731 = vpop.f32.mrb[0].mxu0
  %732 = vmatprep.mubr.f32.mxu0 0.0
  %733 = vmatmul.mubr.f32.gmra.mrb[0].mxu0 %v635
  %v734 = vpop.f32.mrb[0].mxu0
  %v735 = vadd.f32 %v606, %v734
  %v736 = vpop.f32.mrb[0].mxu0
  %737 = vmatprep.mubr.f32.mxu0 0.0
  %738 = vmatmul.mubr.f32.gmra.mrb[0].mxu0 %v638
  %v739 = vpop.f32.mrb[0].mxu0
  %v740 = vadd.f32 %v611, %v739
  %v741 = vpop.f32.mrb[0].mxu0
  %742 = vmatprep.mubr.f32.mxu0 0.0
  %743 = vmatmul.mubr.f32.gmra.mrb[0].mxu0 %v641
  %v744 = vpop.f32.mrb[0].mxu0
  %v745 = vadd.f32 %v616, %v744
  %v746 = vpop.f32.mrb[0].mxu0
  %747 = vdwg.mxu0
  %v748 = vmax.f32 %v710, 0.0
  %v749 = vmax.f32 %v715, 0.0
  %v750 = vmax.f32 %v720, 0.0
  %v751 = vmax.f32 %v725, 0.0
  %v752 = vmax.f32 %v730, 0.0
  %v753 = vmax.f32 %v735, 0.0
  %v754 = vmax.f32 %v740, 0.0
  %v755 = vmax.f32 %v745, 0.0
  %764 = vrot.lane.b32.xlu0 %v748, 126
  %v765 = vpop.permute.xlu0 %764
  %766 = vrot.lane.b32.xlu0 %v749, 126
  %v767 = vpop.permute.xlu0 %766
  %768 = vrot.lane.b32.xlu0 %v750, 126
  %v769 = vpop.permute.xlu0 %768
  %770 = vrot.lane.b32.xlu0 %v751, 126
  %v771 = vpop.permute.xlu0 %770
  %772 = vrot.lane.b32.xlu0 %v752, 126
  %v773 = vpop.permute.xlu0 %772
  %774 = vrot.lane.b32.xlu0 %v753, 126
  %v775 = vpop.permute.xlu0 %774
  %776 = vrot.lane.b32.xlu0 %v754, 126
  %v777 = vpop.permute.xlu0 %776
  %778 = vrot.lane.b32.xlu0 %v755, 126
  %v779 = vpop.permute.xlu0 %778
  %vm788 = vcmask 261120
  %v789 = vsel %vm788, %v748, %v765
  %v790 = vsel %vm788, %v749, %v767
  %v791 = vsel %vm788, %v750, %v769
  %v792 = vsel %vm788, %v751, %v771
  %v793 = vsel %vm788, %v752, %v773
  %v794 = vsel %vm788, %v753, %v775
  %v795 = vsel %vm788, %v754, %v777
  %v796 = vsel %vm788, %v755, %v779
  %vm797 = vcmask 523264
  %798 = vst.msk [vmem:[%s9] sm:$0xff] %vm797, %v789
  %799 = vst.msk [vmem:[%s9 + $0x8] sm:$0xff] %vm797, %v790
  %800 = vst.msk [vmem:[%s9 + $0x10] sm:$0xff] %vm797, %v791
  %801 = vst.msk [vmem:[%s9 + $0x18] sm:$0xff] %vm797, %v792
  %802 = vst.msk [vmem:[%s9 + $0x20] sm:$0xff] %vm797, %v793
  %803 = vst.msk [vmem:[%s9 + $0x28] sm:$0xff] %vm797, %v794
  %804 = vst.msk [vmem:[%s9 + $0x30] sm:$0xff] %vm797, %v795
  %805 = vst.msk [vmem:[%s9 + $0x38] sm:$0xff] %vm797, %v796
  // Predicated region
  $region38: #{cnn_encoder_forward.1} parent=0 // pred_check
    _
  $region39: #{cnn_encoder_forward.1} parent=0 // pred_check_branch
    %807 = sbr.rel (0) target = $region41
  $region40: #{cnn_encoder_forward.1} parent=0 // pred_region
    _
  $region41: #{cnn_encoder_forward.1} parent=0 // pred_fallthru
    _
  // Predicated region
  $region42: #{cnn_encoder_forward.1} parent=0 // pred_check
    _
  $region43: #{cnn_encoder_forward.1} parent=0 // pred_check_branch
    %809 = sbr.rel (0) target = $region45
  $region44: #{cnn_encoder_forward.1} parent=0 // pred_region
    _
  $region45: #{cnn_encoder_forward.1} parent=0 // pred_fallthru
    _

</llo_original>
